<compile_context>
chip_gen: v5e
topology: v5e:2x2
jax: 0.10.0
libtpu: 0.0.40
codegen_flags: <defaults>
</compile_context>

<pallas_src>
import functools
import numpy as np
import jax
import jax.numpy as jnp
from jax.experimental import pallas as pl
from jax.experimental.pallas import tpu as pltpu


MAX_TARGETS = 128     # fixed padded matched-target count (compile-once scatter/gather)
NCORES = 2            # leading "parallel" grid axis (v7x megacore split; harmless on 1-TC chips)
MAX_LANE_TILE = 16384 # upper bound on lane-tile width


def _cdiv(a, b):
    return -(-a // b)


def _round_up(x, m):
    return _cdiv(x, m) * m


def _vmem_limit_bytes() -> int:
    """Chip-aware scoped VMEM limit: 48 MiB on 128-MiB parts, 32 MiB on v7x (64 MiB phys)."""
    try:
        cap = int(pltpu.get_tpu_info().vmem_capacity_bytes)
    except Exception:
        cap = 128 << 20
    return int(min(48 << 20, cap // 2))


def _pick_lane_tile(rows: int, num_classes: int, itemsize: int, budget_bytes: int) -> int:
    """Largest multiple-of-128 lane tile whose double-buffered working set fits budget_bytes.

    Accounts for the 8-sublane padding of the three (1, t) side rows (cls/score/valid)."""
    per_col = 2 * (_round_up(num_classes, 8) * itemsize + 3 * 8 * 4)
    t = (budget_bytes // per_col) // 128 * 128
    t = max(128, min(t, MAX_LANE_TILE))
    # Do not blow up small problems: at most one tile per core.
    t = min(t, _round_up(max(_cdiv(rows, NCORES), 1), 128))
    return int(t)


# ----------------------------------------------------------------------------- cls kernel

def _make_cls_loss_kernel(alpha: float, gamma: float):
    """Sum of varifocal loss and sigmoid-focal loss over a class-major (C, t) logits tile.

    cls_ref: (1, t) target class id per row (== num_classes for background AND for padded
             rows, which never matches the sublane iota => all-zero one-hot column).
    score_ref: (1, t) detached-IoU VFL target score per row.
    valid_ref: (1, t) 1.0 for real rows, 0.0 for padding rows; folded into the per-row
               alpha factors so padded rows contribute exactly zero.
    Accumulates into (1,1,1) per-core output blocks across grid axis 1."""
    c_foc = 2.0 * alpha - 1.0

    def kernel(logits_ref, cls_ref, score_ref, valid_ref, vfl_ref, focal_ref):
        @pl.when(pl.program_id(1) == 0)
        def _init():
            vfl_ref[...] = jnp.zeros_like(vfl_ref)
            focal_ref[...] = jnp.zeros_like(focal_ref)

        x = logits_ref[...].astype(jnp.float32)            # (C, t) class-major logits
        cls = cls_ref[...]                                  # (1, t) int32
        sc = score_ref[...].astype(jnp.float32)             # (1, t) target score
        v = valid_ref[...].astype(jnp.float32)              # (1, t) row validity

        # per-row alpha factors with the valid mask folded in (cheap (1, t) rows)
        a_vfl = alpha * v
        a_foc = (1.0 - alpha) * v

        # in-register one-hot: sublane (class) iota vs lane-dense class-id row
        sub = jax.lax.broadcasted_iota(jnp.int32, x.shape, 0)
        t = (sub == cls).astype(jnp.float32)                 # (C, t)

        # shared transcendentals: one exp + one log1p per element, approx recip on EUP
        e = jnp.exp(-jnp.abs(x))
        softplus = jnp.maximum(x, 0.0) + jnp.log1p(e)        # log(1 + exp(x)), stable
        inv = pl.reciprocal(1.0 + e, approx=True)
        p = jnp.where(x >= 0, inv, e * inv)                   # sigmoid(x)

        def powg(z):
            if gamma == 2.0:
                return z * z
            # TODO(synk): non-integer gamma falls back to jnp.power (extra EUP work).
            return jnp.power(z, gamma)

        xt = x * t
        one_minus_t = 1.0 - t
        ts = sc * t                                            # iou-weighted target score

        # --- varifocal: BCE_with_logits(x, ts) * (alpha*p^g*(1-t) + ts), row-masked ---
        w = a_vfl * (powg(p) * one_minus_t) + ts
        vfl_elem = (softplus - xt * sc) * w

        # --- sigmoid focal: alpha_t * BCE_with_logits(x, t) * (1-p_t)^g, row-masked ---
        one_minus_pt = p - t * (2.0 * p - 1.0)                 # == 1 - (p*t + (1-p)*(1-t))
        alpha_t = a_foc + c_foc * t                            # == (a*t + (1-a)*(1-t)) * v
        focal_elem = alpha_t * (softplus - xt) * powg(one_minus_pt)

        vfl_ref[...] += jnp.reshape(jnp.sum(vfl_elem), (1, 1, 1))
        focal_ref[...] += jnp.reshape(jnp.sum(focal_elem), (1, 1, 1))

    return kernel


def _cls_losses(logits, target_classes, target_score, alpha, gamma):
    """logits [B,Q,C] (f32/bf16), target_classes [B,Q] int32, target_score [B,Q] f32."""
    B, Q, C = logits.shape
    rows = B * Q

    # class-major slab: lanes = rows (full 128-lane fill), sublanes = classes
    x_cm = jnp.transpose(logits.reshape(rows, C))              # (C, rows)
    cls = target_classes.reshape(rows).astype(jnp.int32)
    sc = target_score.reshape(rows).astype(jnp.float32)

    vmem_limit = _vmem_limit_bytes()
    lane_tile = _pick_lane_tile(rows, C, logits.dtype.itemsize, vmem_limit // 3)
    tiles_per_core = _cdiv(rows, NCORES * lane_tile)
    rows_padded = NCORES * tiles_per_core * lane_tile
    pad = rows_padded - rows

    x_cm = jnp.pad(x_cm, ((0, 0), (0, pad)))
    # pad class id with C (background) so padded columns never match the sublane iota
    cls = jnp.pad(cls, (0, pad), constant_values=C).reshape(1, rows_padded)
    sc = jnp.pad(sc, (0, pad)).reshape(1, rows_padded)
    valid = (jnp.arange(rows_padded, dtype=jnp.int32) < rows).astype(jnp.float32)
    valid = valid.reshape(1, rows_padded)

    tpc = tiles_per_core
    vfl, focal = pl.pallas_call(
        _make_cls_loss_kernel(float(alpha), float(gamma)),
        out_shape=(jax.ShapeDtypeStruct((NCORES, 1, 1), jnp.float32),
                   jax.ShapeDtypeStruct((NCORES, 1, 1), jnp.float32)),
        grid=(NCORES, tpc),
        in_specs=[pl.BlockSpec((C, lane_tile), lambda c, i: (0, c * tpc + i)),
                  pl.BlockSpec((1, lane_tile), lambda c, i: (0, c * tpc + i)),
                  pl.BlockSpec((1, lane_tile), lambda c, i: (0, c * tpc + i)),
                  pl.BlockSpec((1, lane_tile), lambda c, i: (0, c * tpc + i))],
        out_specs=(pl.BlockSpec((1, 1, 1), lambda c, i: (c, 0, 0)),
                   pl.BlockSpec((1, 1, 1), lambda c, i: (c, 0, 0))),
        compiler_params=pltpu.CompilerParams(
            dimension_semantics=("parallel", "arbitrary"),
            vmem_limit_bytes=vmem_limit),
    )(x_cm, cls, sc, valid)
    return jnp.sum(vfl), jnp.sum(focal)


# ----------------------------------------------------------------------------- box losses

def _box_losses_jnp(src, tgt, mask):
    """src/tgt: (M, 4) cxcywh, mask: (M,). Tiny fixed-size slab -> plain jnp (fused by XLA)."""
    l1_sum = jnp.sum(jnp.abs(src - tgt) * mask[:, None])

    def to_xyxy(b):
        cx, cy, w, h = b[:, 0], b[:, 1], b[:, 2], b[:, 3]
        return cx - 0.5 * w, cy - 0.5 * h, cx + 0.5 * w, cy + 0.5 * h

    sx1, sy1, sx2, sy2 = to_xyxy(src)
    tx1, ty1, tx2, ty2 = to_xyxy(tgt)

    area_s = (sx2 - sx1) * (sy2 - sy1)
    area_t = (tx2 - tx1) * (ty2 - ty1)

    ix1 = jnp.maximum(sx1, tx1)
    iy1 = jnp.maximum(sy1, ty1)
    ix2 = jnp.minimum(sx2, tx2)
    iy2 = jnp.minimum(sy2, ty2)
    inter = jnp.maximum(ix2 - ix1, 0.0) * jnp.maximum(iy2 - iy1, 0.0)
    union = area_s + area_t - inter
    iou = inter / jnp.maximum(union, 1e-9)

    cx1 = jnp.minimum(sx1, tx1)
    cy1 = jnp.minimum(sy1, ty1)
    cx2 = jnp.maximum(sx2, tx2)
    cy2 = jnp.maximum(sy2, ty2)
    area_c = jnp.maximum(cx2 - cx1, 0.0) * jnp.maximum(cy2 - cy1, 0.0)
    giou = iou - (area_c - union) / jnp.maximum(area_c, 1e-9)

    giou_sum = jnp.sum((1.0 - giou) * mask)
    return l1_sum, giou_sum, iou * mask


# ----------------------------------------------------------------------- jitted device fn

def _criterion_device(pred_logits, pred_boxes, b_idx, s_idx, scat_idx, labels_pad,
                      tgt_boxes, valid_m, num_boxes, *, num_classes, alpha, gamma):
    B, Q, C = pred_logits.shape

    # --- box losses on the fixed (M, 4) matched slab ---
    src_boxes = pred_boxes[b_idx, s_idx].astype(jnp.float32)          # (M, 4) cxcywh
    l1_sum, giou_sum, iou = _box_losses_jnp(src_boxes, tgt_boxes, valid_m)
    iou_det = jax.lax.stop_gradient(iou)                               # reference detaches IoU

    # --- compact classification targets: scatter into a (B, Q+1) buffer, drop dummy col Q ---
    tclasses = jnp.full((B, Q + 1), num_classes, jnp.int32)
    tclasses = tclasses.at[b_idx, scat_idx].set(labels_pad)[:, :Q]
    tscore = jnp.zeros((B, Q + 1), jnp.float32)
    tscore = tscore.at[b_idx, scat_idx].set(iou_det)[:, :Q]

    vfl_sum, focal_sum = _cls_losses(pred_logits, tclasses, tscore, alpha, gamma)

    inv_nb = 1.0 / num_boxes
    return {'loss_bbox': l1_sum * inv_nb,
            'loss_giou': giou_sum * inv_nb,
            'loss_vfl': vfl_sum * inv_nb,
            'loss_focal': focal_sum * inv_nb}


_criterion_device_jit = functools.partial(
    jax.jit, static_argnames=("num_classes", "alpha", "gamma"))(_criterion_device)


# --------------------------------------------------------------------------- criterion

def identity_matcher(outputs, targets):
    # TODO(synk): stands in for the Hungarian matcher of the reference.
    indices = []
    for t in targets:
        n = int(np.asarray(t['labels']).shape[0])
        idx = np.arange(n, dtype=np.int64)
        indices.append((idx, idx))
    return {'indices': indices}


class CriterionDetectionPallas:
    """JAX/Pallas equivalent of CriterionDetection.forward (losses: 'boxes','giou','vfl','focal')."""

    def __init__(self, losses, weight_dict, num_classes=80, alpha=0.75, gamma=2.0,
                 box_fmt='cxcywh', matcher=None, max_targets=MAX_TARGETS):
        assert matcher is not None, ''
        assert box_fmt == 'cxcywh'
        self.losses = losses
        self.weight_dict = weight_dict
        self.num_classes = num_classes
        self.alpha = float(alpha)
        self.gamma = float(gamma)
        self.matcher = matcher
        self.max_targets = int(max_targets)

    def __call__(self, outputs, targets):
        matched = self.matcher(outputs, targets)
        indices = matched['indices']

        pred_logits = jnp.asarray(outputs['pred_logits'])               # [B, Q, C]
        pred_boxes = jnp.asarray(outputs['pred_boxes'], jnp.float32)    # [B, Q, 4] cxcywh
        B, Q, C = pred_logits.shape
        assert C == self.num_classes

        # --- host-side glue: gather matched pairs, pad to a FIXED max_targets length
        #     so the jitted device function compiles exactly once per shape. ---
        batch_list, src_list, label_list, box_list = [], [], [], []
        for bi, (t, (src, tgt)) in enumerate(zip(targets, indices)):
            src = np.asarray(src, np.int64)
            tgt = np.asarray(tgt, np.int64)
            batch_list.append(np.full(src.shape, bi, np.int64))
            src_list.append(src)
            label_list.append(np.asarray(t['labels'], np.int64)[tgt])
            box_list.append(np.asarray(t['boxes'], np.float32).reshape(-1, 4)[tgt])
        batch_idx = np.concatenate(batch_list) if batch_list else np.zeros((0,), np.int64)
        src_idx = np.concatenate(src_list) if src_list else np.zeros((0,), np.int64)
        labels_o = np.concatenate(label_list) if label_list else np.zeros((0,), np.int64)
        boxes_o = (np.concatenate(box_list, axis=0) if box_list
                   else np.zeros((0, 4), np.float32))

        N = int(src_idx.shape[0])
        num_boxes = float(max(N, 1))                  # _get_positive_nums
        M = self.max_targets
        assert N <= M, f"number of matched targets {N} exceeds max_targets {M}"

        valid = np.zeros((M,), np.float32); valid[:N] = 1.0
        b_pad = np.zeros((M,), np.int32);   b_pad[:N] = batch_idx
        s_pad = np.zeros((M,), np.int32);   s_pad[:N] = src_idx
        scat_pad = np.full((M,), Q, np.int32)          # padded entries scatter into dummy col Q
        scat_pad[:N] = src_idx
        lab_pad = np.full((M,), self.num_classes, np.int32); lab_pad[:N] = labels_o
        tbox_pad = np.zeros((M, 4), np.float32); tbox_pad[:N] = boxes_o

        raw = _criterion_device_jit(
            pred_logits, pred_boxes,
            jnp.asarray(b_pad), jnp.asarray(s_pad), jnp.asarray(scat_pad),
            jnp.asarray(lab_pad), jnp.asarray(tbox_pad), jnp.asarray(valid),
            jnp.asarray(num_boxes, jnp.float32),
            num_classes=self.num_classes, alpha=self.alpha, gamma=self.gamma)

        out = {}
        if 'boxes' in self.losses:
            out['loss_bbox'] = raw['loss_bbox']
            out['loss_giou'] = raw['loss_giou']
        if 'giou' in self.losses:
            out['loss_giou'] = raw['loss_giou']
        if 'vfl' in self.losses:
            out['loss_vfl'] = raw['loss_vfl']
        if 'focal' in self.losses:
            out['loss_focal'] = raw['loss_focal']

        return {k: out[k] * self.weight_dict[k] for k in out if k in self.weight_dict}


# --------------------------------------------------------------------------------- main

if __name__ == "__main__":
    key = jax.random.PRNGKey(0)
    B, Q, C = 2, 64, 16
    k1, k2, k3, k4 = jax.random.split(key, 4)

    pred_logits = jax.random.normal(k1, (B, Q, C), jnp.float32)
    pred_boxes = jax.nn.sigmoid(jax.random.normal(k2, (B, Q, 4), jnp.float32))  # cxcywh in (0,1)

    targets = []
    for bi, n in enumerate([3, 2]):
        kb = jax.random.fold_in(k3, bi)
        kl = jax.random.fold_in(k4, bi)
        boxes = jax.nn.sigmoid(jax.random.normal(kb, (n, 4), jnp.float32)) * 0.5 + 0.25
        labels = jax.random.randint(kl, (n,), 0, C)
        targets.append({'boxes': np.asarray(boxes), 'labels': np.asarray(labels)})

    criterion = CriterionDetectionPallas(
        losses=['boxes', 'vfl', 'focal'],
        weight_dict={'loss_bbox': 5.0, 'loss_giou': 2.0, 'loss_vfl': 1.0, 'loss_focal': 1.0},
        num_classes=C, alpha=0.75, gamma=2.0, box_fmt='cxcywh', matcher=identity_matcher)

    losses = criterion({'pred_logits': pred_logits, 'pred_boxes': pred_boxes}, targets)
    losses = {k: jax.block_until_ready(v) for k, v in losses.items()}
    assert all(np.isfinite(np.asarray(v)) for v in losses.values())
    print("KERNEL_OK")
</pallas_src>

<mosaic_0001>
module attributes {stable_mosaic.version = 11 : i64} {
  func.func @kernel(%arg0: i32, %arg1: i32, %arg2: memref<16x128xf32, #tpu.memory_space<vmem>>, %arg3: memref<1x128xi32, #tpu.memory_space<vmem>>, %arg4: memref<1x128xf32, #tpu.memory_space<vmem>>, %arg5: memref<1x128xf32, #tpu.memory_space<vmem>>, %arg6: memref<1x1x1xf32, #tpu.memory_space<vmem>>, %arg7: memref<1x1x1xf32, #tpu.memory_space<vmem>>) attributes {dimension_semantics = [#tpu.dimension_semantics<parallel>, #tpu.dimension_semantics<arbitrary>], iteration_bounds = array<i64: 2, 1>, scalar_prefetch = 0 : i64, scratch_operands = 0 : i64, tpu.core_type = #tpu.core_type<tc>, window_params = [{transform_indices = @transform_0, window_bounds = array<i64: 16, 128>}, {transform_indices = @transform_1, window_bounds = array<i64: 1, 128>}, {transform_indices = @transform_2, window_bounds = array<i64: 1, 128>}, {transform_indices = @transform_3, window_bounds = array<i64: 1, 128>}, {transform_indices = @transform_4, window_bounds = array<i64: 1, 1, 1>}, {transform_indices = @transform_5, window_bounds = array<i64: 1, 1, 1>}]} {
    %c0_i32 = arith.constant 0 : i32
    %0 = arith.cmpi eq, %arg1, %c0_i32 : i32
    %1 = arith.extui %0 : i1 to i32
    %c0_i32_0 = arith.constant 0 : i32
    %2 = arith.cmpi ne, %1, %c0_i32_0 : i32
    scf.if %2 {
      %cst_31 = arith.constant 0.000000e+00 : f32
      %75 = vector.broadcast %cst_31 : f32 to vector<1x1x1xf32>
      %c0_32 = arith.constant 0 : index
      %c0_33 = arith.constant 0 : index
      %c0_34 = arith.constant 0 : index
      %76 = vector.load %arg6[%c0_32, %c0_33, %c0_34] : memref<1x1x1xf32, #tpu.memory_space<vmem>>, vector<1x1x1xf32>
      tpu.vector_store %arg6[%c0_32, %c0_33, %c0_34], %75 {strides = array<i32>} : memref<1x1x1xf32, #tpu.memory_space<vmem>>, vector<1x1x1xf32>,
      %cst_35 = arith.constant 0.000000e+00 : f32
      %77 = vector.broadcast %cst_35 : f32 to vector<1x1x1xf32>
      %c0_36 = arith.constant 0 : index
      %c0_37 = arith.constant 0 : index
      %c0_38 = arith.constant 0 : index
      %78 = vector.load %arg7[%c0_36, %c0_37, %c0_38] : memref<1x1x1xf32, #tpu.memory_space<vmem>>, vector<1x1x1xf32>
      tpu.vector_store %arg7[%c0_36, %c0_37, %c0_38], %77 {strides = array<i32>} : memref<1x1x1xf32, #tpu.memory_space<vmem>>, vector<1x1x1xf32>,
    } else {
    }
    %c0 = arith.constant 0 : index
    %c0_1 = arith.constant 0 : index
    %3 = vector.load %arg2[%c0, %c0_1] : memref<16x128xf32, #tpu.memory_space<vmem>>, vector<16x128xf32>
    %c0_2 = arith.constant 0 : index
    %c0_3 = arith.constant 0 : index
    %4 = vector.load %arg3[%c0_2, %c0_3] : memref<1x128xi32, #tpu.memory_space<vmem>>, vector<1x128xi32>
    %c0_4 = arith.constant 0 : index
    %c0_5 = arith.constant 0 : index
    %5 = vector.load %arg4[%c0_4, %c0_5] : memref<1x128xf32, #tpu.memory_space<vmem>>, vector<1x128xf32>
    %c0_6 = arith.constant 0 : index
    %c0_7 = arith.constant 0 : index
    %6 = vector.load %arg5[%c0_6, %c0_7] : memref<1x128xf32, #tpu.memory_space<vmem>>, vector<1x128xf32>
    %cst = arith.constant 7.500000e-01 : f32
    %7 = vector.broadcast %cst : f32 to vector<1x128xf32>
    %8 = arith.mulf %7, %6 : vector<1x128xf32>
    %cst_8 = arith.constant 2.500000e-01 : f32
    %9 = vector.broadcast %cst_8 : f32 to vector<1x128xf32>
    %10 = arith.mulf %9, %6 : vector<1x128xf32>
    %11 = tpu.iota {dimensions = array<i32: 0>} : vector<16x128xi32>
    %12 = vector.broadcast %4 : vector<1x128xi32> to vector<16x128xi32>
    %13 = arith.cmpi eq, %11, %12 : vector<16x128xi32>
    %14 = arith.extui %13 : vector<16x128xi1> to vector<16x128xi32>
    %15 = arith.sitofp %14 : vector<16x128xi32> to vector<16x128xf32>
    %16 = math.absf %3 : vector<16x128xf32>
    %cst_9 = arith.constant 0.000000e+00 : f32
    %17 = vector.broadcast %cst_9 : f32 to vector<16x128xf32>
    %18 = arith.subf %17, %16 : vector<16x128xf32>
    %19 = math.exp %18 : vector<16x128xf32>
    %cst_10 = arith.constant 0.000000e+00 : f32
    %20 = vector.broadcast %cst_10 : f32 to vector<16x128xf32>
    %21 = arith.maximumf %3, %20 : vector<16x128xf32>
    %22 = math.log1p %19 : vector<16x128xf32>
    %23 = arith.addf %21, %22 : vector<16x128xf32>
    %cst_11 = arith.constant 1.000000e+00 : f32
    %24 = vector.broadcast %cst_11 : f32 to vector<16x128xf32>
    %25 = arith.addf %24, %19 : vector<16x128xf32>
    %26 = tpu.reciprocal %25 {approx = true} : vector<16x128xf32> -> vector<16x128xf32>
    %cst_12 = arith.constant 0.000000e+00 : f32
    %27 = vector.broadcast %cst_12 : f32 to vector<16x128xf32>
    %28 = arith.cmpf oge, %3, %27 : vector<16x128xf32>
    %29 = arith.mulf %19, %26 : vector<16x128xf32>
    %30 = arith.select %28, %26, %29 : vector<16x128xi1>, vector<16x128xf32>
    %31 = arith.mulf %3, %15 : vector<16x128xf32>
    %cst_13 = arith.constant 1.000000e+00 : f32
    %32 = vector.broadcast %cst_13 : f32 to vector<16x128xf32>
    %33 = arith.subf %32, %15 : vector<16x128xf32>
    %34 = vector.broadcast %5 : vector<1x128xf32> to vector<16x128xf32>
    %35 = arith.mulf %34, %15 : vector<16x128xf32>
    %36 = arith.mulf %30, %30 : vector<16x128xf32>
    %37 = arith.mulf %36, %33 : vector<16x128xf32>
    %38 = vector.broadcast %8 : vector<1x128xf32> to vector<16x128xf32>
    %39 = arith.mulf %38, %37 : vector<16x128xf32>
    %40 = arith.addf %39, %35 : vector<16x128xf32>
    %41 = vector.broadcast %5 : vector<1x128xf32> to vector<16x128xf32>
    %42 = arith.mulf %31, %41 : vector<16x128xf32>
    %43 = arith.subf %23, %42 : vector<16x128xf32>
    %44 = arith.mulf %43, %40 : vector<16x128xf32>
    %cst_14 = arith.constant 2.000000e+00 : f32
    %45 = vector.broadcast %cst_14 : f32 to vector<16x128xf32>
    %46 = arith.mulf %45, %30 : vector<16x128xf32>
    %cst_15 = arith.constant 1.000000e+00 : f32
    %47 = vector.broadcast %cst_15 : f32 to vector<16x128xf32>
    %48 = arith.subf %46, %47 : vector<16x128xf32>
    %49 = arith.mulf %15, %48 : vector<16x128xf32>
    %50 = arith.subf %30, %49 : vector<16x128xf32>
    %cst_16 = arith.constant 5.000000e-01 : f32
    %51 = vector.broadcast %cst_16 : f32 to vector<16x128xf32>
    %52 = arith.mulf %51, %15 : vector<16x128xf32>
    %53 = vector.broadcast %10 : vector<1x128xf32> to vector<16x128xf32>
    %54 = arith.addf %53, %52 : vector<16x128xf32>
    %55 = arith.subf %23, %31 : vector<16x128xf32>
    %56 = arith.mulf %54, %55 : vector<16x128xf32>
    %57 = arith.mulf %50, %50 : vector<16x128xf32>
    %58 = arith.mulf %56, %57 : vector<16x128xf32>
    %c0_17 = arith.constant 0 : index
    %c0_18 = arith.constant 0 : index
    %c0_19 = arith.constant 0 : index
    %59 = vector.load %arg6[%c0_17, %c0_18, %c0_19] : memref<1x1x1xf32, #tpu.memory_space<vmem>>, vector<1x1x1xf32>
    %60 = vector.shape_cast %44 : vector<16x128xf32> to vector<1x16x128xf32>
    %cst_20 = arith.constant dense<0.000000e+00> : vector<1xf32>
    %61 = vector.multi_reduction <add>, %60, %cst_20 [1, 2] : vector<1x16x128xf32> to vector<1xf32>
    %62 = vector.shape_cast %61 : vector<1xf32> to vector<1x1x1xf32>
    %63 = vector.extract %62[0, 0, 0] : f32 from vector<1x1x1xf32>
    %64 = vector.broadcast %63 : f32 to vector<1x1x1xf32>
    %65 = arith.addf %59, %64 : vector<1x1x1xf32>
    %c0_21 = arith.constant 0 : index
    %c0_22 = arith.constant 0 : index
    %c0_23 = arith.constant 0 : index
    %66 = vector.load %arg6[%c0_21, %c0_22, %c0_23] : memref<1x1x1xf32, #tpu.memory_space<vmem>>, vector<1x1x1xf32>
    tpu.vector_store %arg6[%c0_21, %c0_22, %c0_23], %65 {strides = array<i32>} : memref<1x1x1xf32, #tpu.memory_space<vmem>>, vector<1x1x1xf32>,
    %c0_24 = arith.constant 0 : index
    %c0_25 = arith.constant 0 : index
    %c0_26 = arith.constant 0 : index
    %67 = vector.load %arg7[%c0_24, %c0_25, %c0_26] : memref<1x1x1xf32, #tpu.memory_space<vmem>>, vector<1x1x1xf32>
    %68 = vector.shape_cast %58 : vector<16x128xf32> to vector<1x16x128xf32>
    %cst_27 = arith.constant dense<0.000000e+00> : vector<1xf32>
    %69 = vector.multi_reduction <add>, %68, %cst_27 [1, 2] : vector<1x16x128xf32> to vector<1xf32>
    %70 = vector.shape_cast %69 : vector<1xf32> to vector<1x1x1xf32>
    %71 = vector.extract %70[0, 0, 0] : f32 from vector<1x1x1xf32>
    %72 = vector.broadcast %71 : f32 to vector<1x1x1xf32>
    %73 = arith.addf %67, %72 : vector<1x1x1xf32>
    %c0_28 = arith.constant 0 : index
    %c0_29 = arith.constant 0 : index
    %c0_30 = arith.constant 0 : index
    %74 = vector.load %arg7[%c0_28, %c0_29, %c0_30] : memref<1x1x1xf32, #tpu.memory_space<vmem>>, vector<1x1x1xf32>
    tpu.vector_store %arg7[%c0_28, %c0_29, %c0_30], %73 {strides = array<i32>} : memref<1x1x1xf32, #tpu.memory_space<vmem>>, vector<1x1x1xf32>,
    return
  }
  func.func @transform_0(%arg0: i32, %arg1: i32) -> (i32, i32) {
    %c1_i32 = arith.constant 1 : i32
    %0 = arith.muli %arg0, %c1_i32 : i32
    %1 = arith.addi %0, %arg1 : i32
    %c0_i32 = arith.constant 0 : i32
    %c0_i32_0 = arith.constant 0 : i32
    return %c0_i32, %1 : i32, i32
  }
  func.func @transform_1(%arg0: i32, %arg1: i32) -> (i32, i32) {
    %c1_i32 = arith.constant 1 : i32
    %0 = arith.muli %arg0, %c1_i32 : i32
    %1 = arith.addi %0, %arg1 : i32
    %c0_i32 = arith.constant 0 : i32
    %c0_i32_0 = arith.constant 0 : i32
    return %c0_i32, %1 : i32, i32
  }
  func.func @transform_2(%arg0: i32, %arg1: i32) -> (i32, i32) {
    %c1_i32 = arith.constant 1 : i32
    %0 = arith.muli %arg0, %c1_i32 : i32
    %1 = arith.addi %0, %arg1 : i32
    %c0_i32 = arith.constant 0 : i32
    %c0_i32_0 = arith.constant 0 : i32
    return %c0_i32, %1 : i32, i32
  }
  func.func @transform_3(%arg0: i32, %arg1: i32) -> (i32, i32) {
    %c1_i32 = arith.constant 1 : i32
    %0 = arith.muli %arg0, %c1_i32 : i32
    %1 = arith.addi %0, %arg1 : i32
    %c0_i32 = arith.constant 0 : i32
    %c0_i32_0 = arith.constant 0 : i32
    return %c0_i32, %1 : i32, i32
  }
  func.func @transform_4(%arg0: i32, %arg1: i32) -> (i32, i32, i32) {
    %c0_i32 = arith.constant 0 : i32
    %c0_i32_0 = arith.constant 0 : i32
    %c0_i32_1 = arith.constant 0 : i32
    return %arg0, %c0_i32, %c0_i32_0 : i32, i32, i32
  }
  func.func @transform_5(%arg0: i32, %arg1: i32) -> (i32, i32, i32) {
    %c0_i32 = arith.constant 0 : i32
    %c0_i32_0 = arith.constant 0 : i32
    %c0_i32_1 = arith.constant 0 : i32
    return %arg0, %c0_i32, %c0_i32_0 : i32, i32, i32
  }
}

</mosaic_0001>

<llo_original>
// kernel: _criterion_device.1
$region0: #{_criterion_device.1}
  #allocation0 [shape = 'u32[]', space=smem, size = 0x4, offset = 0x4, fixed_abs, tag = 'smem constant byte address 0x4 - core index']
  #allocation1 [shape = 'u32[72,128]{1,0:T(1,128)}', space=vmem, size = 0x9000, scoped, tag = 'internal scratch']
  %s0 = inlined_call_operand.vmem [shape: f32[16,256], index: 0, kind: input, shape index: {}]
  %s1 = inlined_call_operand.vmem [shape: s32[1,256], index: 1, kind: input, shape index: {}]
  %s2 = inlined_call_operand.vmem [shape: f32[1,256], index: 2, kind: input, shape index: {}]
  %s3 = inlined_call_operand.vmem [shape: f32[1,256], index: 3, kind: input, shape index: {}]
  %s4 = inlined_call_operand.vmem [shape: f32[2,1,1], index: 4, kind: output, shape index: {0}]
  %s5 = inlined_call_operand.vmem [shape: f32[2,1,1], index: 5, kind: output, shape index: {1}]
  %6 = xla_tuple %s4, %s5
  %s7 = sld [smem:[#allocation0]]
  $region99: #{_criterion_device.1} parent=0
    _
  %s9 = ssub.s32 1, %s7
  %s10 = scalar_select 0, %s9, %s7
  $region1: #{_criterion_device.1} parent=0
    #allocation2 [shape = 'u8[16384]{0}', space=vmem, size = 0x4000, scoped, tag = 'input window, operand 0']
    loop: start=0, step=1, limit=4
    $region2: #{_criterion_device.1} parent=1 // loop_pre_header
      _
    $region3: #{_criterion_device.1} parent=1 // loop_header
      %s12 = sphi 0, %s16
      %p13 = scmp.ge.s32.totalorder %s12, 4
      %s19 = sphi 0, %s31
      %s20 = sphi 0, %s27
      %s21 = sphi 0, %s19
      %s22 = sphi 0, %s20
      %s23 = sphi 0, %s21
      %s24 = sphi 0, %s22
      %s36 = sphi 0, %s38
      %s39 = sphi 0, %s36
      %s40 = sphi 0, %s39
      %s56 = sphi 0, %s40
      %s64 = sphi 0, %s66
      %s67 = sphi 0, %s64
      %s68 = sphi 0, %s67
      %s84 = sphi 0, %s68
      %s92 = sphi 0, %s94
      %s95 = sphi 0, %s92
      %s96 = sphi 0, %s95
      %s112 = sphi 0, %s96
      %s120 = sphi 0, %s122
      %s123 = sphi 0, %s120
      %s124 = sphi 0, %s123
      %s140 = sphi 0, %s124
      %s146 = sphi 0, %s148
      %s149 = sphi 0, %s146
      %s150 = sphi 0, %s149
      %s166 = sphi 0, %s150
      %s172 = sphi 0, %s174
      %s175 = sphi 0, %s172
      %s176 = sphi 0, %s175
      %s192 = sphi 0, %s176
    $region4: #{_criterion_device.1} parent=1 // loop_header_branch
      %15 = sbr.rel (%p13) target = $region8
    $region5: #{_criterion_device.1} parent=1 // loop_body
      %s17 = ssub.s32 %s12, 1
      %s18 = ssub.s32 %s12, 2
      %s25 = sadd.s32 1, %s20
      %p26 = scmp.ge.s32.totalorder %s25, 1
      %s27 = scalar_select %p26, 0, %s25
      %s28 = sadd.s32 1, %s19
      %s29 = scalar_select %p26, %s28, %s19
      %p30 = scmp.ge.s32.totalorder %s29, 2
      %s31 = scalar_select %p30, 0, %s29
      %s32 = sadd.s32 %s19, %s20
      %s33 = sadd.s32 %s31, %s27
      %s34 = ssub.s32 %s32, %s33
      %p35 = scmp.eq.s32.totalorder %s34, 0
      %s37 = sadd.s32 %s36, 1
      %s38 = scalar_select %p35, %s36, %s37
      %p41 = pneg %p35
      %p42 = scmp.eq.s32.totalorder %s12, 1
      %p43 = por %p41, %p42
      %p44 = scmp.ne.s32.totalorder %s36, %s39
      %p45 = scmp.eq.s32.totalorder %s12, 0
      %p46 = por %p44, %p45
      %p47 = scmp.ne.s32.totalorder %s36, %s39
      %p48 = scmp.eq.s32.totalorder %s17, 1
      %p49 = por %p47, %p48
      %p50 = scmp.ne.s32.totalorder %s39, %s40
      %p51 = scmp.eq.s32.totalorder %s17, 0
      %p52 = por %p50, %p51
      %p53 = scmp.ne.s32.totalorder %s39, %s40
      %p54 = scmp.eq.s32.totalorder %s18, 1
      %p55 = por %p53, %p54
      %p57 = scmp.ne.s32.totalorder %s40, %s56
      %p58 = scmp.eq.s32.totalorder %s18, 0
      %p59 = por %p57, %p58
      %s60 = sadd.s32 %s19, %s20
      %s61 = sadd.s32 %s31, %s27
      %s62 = ssub.s32 %s60, %s61
      %p63 = scmp.eq.s32.totalorder %s62, 0
      %s65 = sadd.s32 %s64, 1
      %s66 = scalar_select %p63, %s64, %s65
      %p69 = pneg %p63
      %p70 = scmp.eq.s32.totalorder %s12, 1
      %p71 = por %p69, %p70
      %p72 = scmp.ne.s32.totalorder %s64, %s67
      %p73 = scmp.eq.s32.totalorder %s12, 0
      %p74 = por %p72, %p73
      %p75 = scmp.ne.s32.totalorder %s64, %s67
      %p76 = scmp.eq.s32.totalorder %s17, 1
      %p77 = por %p75, %p76
      %p78 = scmp.ne.s32.totalorder %s67, %s68
      %p79 = scmp.eq.s32.totalorder %s17, 0
      %p80 = por %p78, %p79
      %p81 = scmp.ne.s32.totalorder %s67, %s68
      %p82 = scmp.eq.s32.totalorder %s18, 1
      %p83 = por %p81, %p82
      %p85 = scmp.ne.s32.totalorder %s68, %s84
      %p86 = scmp.eq.s32.totalorder %s18, 0
      %p87 = por %p85, %p86
      %s88 = sadd.s32 %s19, %s20
      %s89 = sadd.s32 %s31, %s27
      %s90 = ssub.s32 %s88, %s89
      %p91 = scmp.eq.s32.totalorder %s90, 0
      %s93 = sadd.s32 %s92, 1
      %s94 = scalar_select %p91, %s92, %s93
      %p97 = pneg %p91
      %p98 = scmp.eq.s32.totalorder %s12, 1
      %p99 = por %p97, %p98
      %p100 = scmp.ne.s32.totalorder %s92, %s95
      %p101 = scmp.eq.s32.totalorder %s12, 0
      %p102 = por %p100, %p101
      %p103 = scmp.ne.s32.totalorder %s92, %s95
      %p104 = scmp.eq.s32.totalorder %s17, 1
      %p105 = por %p103, %p104
      %p106 = scmp.ne.s32.totalorder %s95, %s96
      %p107 = scmp.eq.s32.totalorder %s17, 0
      %p108 = por %p106, %p107
      %p109 = scmp.ne.s32.totalorder %s95, %s96
      %p110 = scmp.eq.s32.totalorder %s18, 1
      %p111 = por %p109, %p110
      %p113 = scmp.ne.s32.totalorder %s96, %s112
      %p114 = scmp.eq.s32.totalorder %s18, 0
      %p115 = por %p113, %p114
      %s116 = sadd.s32 %s19, %s20
      %s117 = sadd.s32 %s31, %s27
      %s118 = ssub.s32 %s116, %s117
      %p119 = scmp.eq.s32.totalorder %s118, 0
      %s121 = sadd.s32 %s120, 1
      %s122 = scalar_select %p119, %s120, %s121
      %p125 = pneg %p119
      %p126 = scmp.eq.s32.totalorder %s12, 1
      %p127 = por %p125, %p126
      %p128 = scmp.ne.s32.totalorder %s120, %s123
      %p129 = scmp.eq.s32.totalorder %s12, 0
      %p130 = por %p128, %p129
      %p131 = scmp.ne.s32.totalorder %s120, %s123
      %p132 = scmp.eq.s32.totalorder %s17, 1
      %p133 = por %p131, %p132
      %p134 = scmp.ne.s32.totalorder %s123, %s124
      %p135 = scmp.eq.s32.totalorder %s17, 0
      %p136 = por %p134, %p135
      %p137 = scmp.ne.s32.totalorder %s123, %s124
      %p138 = scmp.eq.s32.totalorder %s18, 1
      %p139 = por %p137, %p138
      %p141 = scmp.ne.s32.totalorder %s124, %s140
      %p142 = scmp.eq.s32.totalorder %s18, 0
      %p143 = por %p141, %p142
      %s144 = ssub.s32 %s19, %s31
      %p145 = scmp.eq.s32.totalorder %s144, 0
      %s147 = sadd.s32 %s146, 1
      %s148 = scalar_select %p145, %s146, %s147
      %p151 = pneg %p145
      %p152 = scmp.eq.s32.totalorder %s12, 1
      %p153 = por %p151, %p152
      %p154 = scmp.ne.s32.totalorder %s146, %s149
      %p155 = scmp.eq.s32.totalorder %s12, 0
      %p156 = por %p154, %p155
      %p157 = scmp.ne.s32.totalorder %s146, %s149
      %p158 = scmp.eq.s32.totalorder %s17, 1
      %p159 = por %p157, %p158
      %p160 = scmp.ne.s32.totalorder %s149, %s150
      %p161 = scmp.eq.s32.totalorder %s17, 0
      %p162 = por %p160, %p161
      %p163 = scmp.ne.s32.totalorder %s149, %s150
      %p164 = scmp.eq.s32.totalorder %s18, 1
      %p165 = por %p163, %p164
      %p167 = scmp.ne.s32.totalorder %s150, %s166
      %p168 = scmp.eq.s32.totalorder %s18, 0
      %p169 = por %p167, %p168
      %s170 = ssub.s32 %s19, %s31
      %p171 = scmp.eq.s32.totalorder %s170, 0
      %s173 = sadd.s32 %s172, 1
      %s174 = scalar_select %p171, %s172, %s173
      %p177 = pneg %p171
      %p178 = scmp.eq.s32.totalorder %s12, 1
      %p179 = por %p177, %p178
      %p180 = scmp.ne.s32.totalorder %s172, %s175
      %p181 = scmp.eq.s32.totalorder %s12, 0
      %p182 = por %p180, %p181
      %p183 = scmp.ne.s32.totalorder %s172, %s175
      %p184 = scmp.eq.s32.totalorder %s17, 1
      %p185 = por %p183, %p184
      %p186 = scmp.ne.s32.totalorder %s175, %s176
      %p187 = scmp.eq.s32.totalorder %s17, 0
      %p188 = por %p186, %p187
      %p189 = scmp.ne.s32.totalorder %s175, %s176
      %p190 = scmp.eq.s32.totalorder %s18, 1
      %p191 = por %p189, %p190
      %p193 = scmp.ne.s32.totalorder %s176, %s192
      %p194 = scmp.eq.s32.totalorder %s18, 0
      %p195 = por %p193, %p194
      %p196 = scmp.le.s32.totalorder 1, %s12
      %p197 = scmp.lt.s32.totalorder %s12, 3
      %p198 = pnand %p196, %p197
      %p199 = pneg %p198
      // Predicated region
      $region9: #{_criterion_device.1} parent=5 // pred_check
        _
      $region10: #{_criterion_device.1} parent=5 // pred_check_branch
        %201 = sbr.rel (%p198) target = $region12
      $region11: #{_criterion_device.1} parent=5 // pred_region
        %s202 = ssub.s32 %s12, 1
      $region12: #{_criterion_device.1} parent=5 // pred_fallthru
        _
      %p203 = scmp.lt.s32.totalorder %s12, 2
      // Predicated region
      $region13: #{_criterion_device.1} parent=5 // pred_check
        %p204 = pneg %p203
      $region14: #{_criterion_device.1} parent=5 // pred_check_branch
        %206 = sbr.rel (%p204) target = $region16
      $region15: #{_criterion_device.1} parent=5 // pred_region
        // Predicated region
        $region17: #{_criterion_device.1} parent=15 // pred_check
          %p207 = pneg %p46
        $region18: #{_criterion_device.1} parent=15 // pred_check_branch
          %209 = sbr.rel (%p207) target = $region20
        $region19: #{_criterion_device.1} parent=15 // pred_region
          %s210 = sand.u32 %s36, 1
          %s211 = sand.u32 %s36, 1
          %s212 = smul.addr %s211, 16
          %s213 = scalar_lea.vmem [#allocation2], %s212
          %s214 = sadd.s32 %s19, %s20
          %s215 = smul.addr %s214, 8
          %s216 = scalar_lea.vmem %s0, %s215
          // Predicated region
          $region21: #{_criterion_device.1} parent=19 // pred_check
            _
          $region22: #{_criterion_device.1} parent=19 // pred_check_branch
            %218 = sbr.rel (0) target = $region24
          $region23: #{_criterion_device.1} parent=19 // pred_region
            // Predicated region
            $region25: #{_criterion_device.1} parent=23 // pred_check
              _
            $region26: #{_criterion_device.1} parent=23 // pred_check_branch
              %220 = sbr.rel (0) target = $region28
            $region27: #{_criterion_device.1} parent=23 // pred_region
              // Predicated region
              $region40: #{_criterion_device.1} parent=27 // pred_check
                _
              $region41: #{_criterion_device.1} parent=27 // pred_check_branch
                %238 = sbr.rel (0) target = $region43
              $region42: #{_criterion_device.1} parent=27 // pred_region
                loop: start=0, step=1, limit=1
                $region44: #{_criterion_device.1} parent=42 // loop_pre_header
                  _
                $region45: #{_criterion_device.1} parent=42 // loop_header
                  %s240 = sphi 0, %s244
                  %p241 = scmp.ge.s32.totalorder %s240, 1
                  %s245 = sphi %s216, %s216
                  %s246 = sphi %s213, %s213
                $region46: #{_criterion_device.1} parent=42 // loop_header_branch
                  %243 = sbr.rel (%p241) target = $region50
                $region47: #{_criterion_device.1} parent=42 // loop_body
                  %v247 = vld [vmem:[%s245] sm:$0xff]
                  %248 = vst [vmem:[%s246] sm:$0xff] %v247
                  %v249 = vld [vmem:[%s245 + $0x10] sm:$0xff]
                  %250 = vst [vmem:[%s246 + $0x8] sm:$0xff] %v249
                $region48: #{_criterion_device.1} parent=42 // loop_footer
                  %s244 = sadd.s32 1, %s240
                $region49: #{_criterion_device.1} parent=42 // loop_footer_branch
                  %239 = sbr.rel target = $region45
                $region50: #{_criterion_device.1} parent=42 // loop_exit
                  _
              $region43: #{_criterion_device.1} parent=27 // pred_fallthru
                _
              // Predicated region
              $region51: #{_criterion_device.1} parent=27 // pred_check
                _
              $region52: #{_criterion_device.1} parent=27 // pred_check_branch
                %252 = sbr.rel target = $region54
              $region53: #{_criterion_device.1} parent=27 // pred_region
                _
              $region54: #{_criterion_device.1} parent=27 // pred_fallthru
                _
            $region28: #{_criterion_device.1} parent=23 // pred_fallthru
              _
            // Predicated region
            $region29: #{_criterion_device.1} parent=23 // pred_check
              _
            $region30: #{_criterion_device.1} parent=23 // pred_check_branch
              %222 = sbr.rel target = $region32
            $region31: #{_criterion_device.1} parent=23 // pred_region
              %s224 = ssub.s32 256, 1
              loop: start=0, step=1, limit=1
              $region33: #{_criterion_device.1} parent=31 // loop_pre_header
                _
              $region34: #{_criterion_device.1} parent=31 // loop_header
                %s226 = sphi 0, %s230
                %p227 = scmp.ge.s32.totalorder %s226, 1
                %s231 = sphi %s216, %s216
                %s232 = sphi %s213, %s213
              $region35: #{_criterion_device.1} parent=31 // loop_header_branch
                %229 = sbr.rel (%p227) target = $region39
              $region36: #{_criterion_device.1} parent=31 // loop_body
                %v233 = vld [vmem:[%s231] sm:%s224]
                %234 = vst [vmem:[%s232] sm:%s224] %v233
                %v235 = vld [vmem:[%s231 + $0x10] sm:%s224]
                %236 = vst [vmem:[%s232 + $0x8] sm:%s224] %v235
              $region37: #{_criterion_device.1} parent=31 // loop_footer
                %s230 = sadd.s32 1, %s226
              $region38: #{_criterion_device.1} parent=31 // loop_footer_branch
                %225 = sbr.rel target = $region34
              $region39: #{_criterion_device.1} parent=31 // loop_exit
                _
            $region32: #{_criterion_device.1} parent=23 // pred_fallthru
              _
          $region24: #{_criterion_device.1} parent=19 // pred_fallthru
            _
          %253 = vnop
        $region20: #{_criterion_device.1} parent=15 // pred_fallthru
          _
        // Predicated region
        $region55: #{_criterion_device.1} parent=15 // pred_check
          %p254 = pneg %p74
        $region56: #{_criterion_device.1} parent=15 // pred_check_branch
          %256 = sbr.rel (%p254) target = $region58
        $region57: #{_criterion_device.1} parent=15 // pred_region
          %s257 = sadd.s32 %s19, %s20
          %p258 = scmp.lt.s32.totalorder %s257, 1
          %s259 = scalar_select %p258, %s257, 1
          %s260 = scalar_lea.vmem %s1, %s259
          %s261 = sadd.s32 %s19, %s20
        $region58: #{_criterion_device.1} parent=15 // pred_fallthru
          _
        // Predicated region
        $region59: #{_criterion_device.1} parent=15 // pred_check
          %p262 = pneg %p102
        $region60: #{_criterion_device.1} parent=15 // pred_check_branch
          %264 = sbr.rel (%p262) target = $region62
        $region61: #{_criterion_device.1} parent=15 // pred_region
          %s265 = sadd.s32 %s19, %s20
          %p266 = scmp.lt.s32.totalorder %s265, 1
          %s267 = scalar_select %p266, %s265, 1
          %s268 = scalar_lea.vmem %s2, %s267
          %s269 = sadd.s32 %s19, %s20
        $region62: #{_criterion_device.1} parent=15 // pred_fallthru
          _
        // Predicated region
        $region63: #{_criterion_device.1} parent=15 // pred_check
          %p270 = pneg %p130
        $region64: #{_criterion_device.1} parent=15 // pred_check_branch
          %272 = sbr.rel (%p270) target = $region66
        $region65: #{_criterion_device.1} parent=15 // pred_region
          %s273 = sadd.s32 %s19, %s20
          %p274 = scmp.lt.s32.totalorder %s273, 1
          %s275 = scalar_select %p274, %s273, 1
          %s276 = scalar_lea.vmem %s3, %s275
          %s277 = sadd.s32 %s19, %s20
        $region66: #{_criterion_device.1} parent=15 // pred_fallthru
          _
      $region16: #{_criterion_device.1} parent=5 // pred_fallthru
        _
      %p278 = scmp.le.s32.totalorder 1, %s12
      %p279 = scmp.lt.s32.totalorder %s12, 3
      %p280 = pnand %p278, %p279
      %p281 = pneg %p280
      // Predicated region
      $region67: #{_criterion_device.1} parent=5 // pred_check
        _
      $region68: #{_criterion_device.1} parent=5 // pred_check_branch
        %283 = sbr.rel (%p280) target = $region70
      $region69: #{_criterion_device.1} parent=5 // pred_region
        %s284 = ssub.s32 %s12, 1
        %s285 = sand.u32 %s39, 1
        %s286 = sand.u32 %s39, 1
        %s287 = smul.addr %s286, 16
        %s288 = scalar_lea.vmem [#allocation2], %s287
        // Predicated region
        $region71: #{_criterion_device.1} parent=69 // pred_check
          %p289 = pneg %p52
        $region72: #{_criterion_device.1} parent=69 // pred_check_branch
          %291 = sbr.rel (%p289) target = $region74
        $region73: #{_criterion_device.1} parent=69 // pred_region
          _
        $region74: #{_criterion_device.1} parent=69 // pred_fallthru
          _
        %s292 = sand.u32 %s39, 1
        %s293 = sand.u32 %s39, 1
        %s294 = smul.addr %s293, 16
        %s295 = scalar_lea.vmem [#allocation2], %s294
        %p296 = pneg %p52
        %p297 = pneg %p49
        %s298 = sadd.s32 %s21, %s22
        %p299 = scmp.lt.s32.totalorder %s298, 1
        %s300 = scalar_select %p299, %s298, 1
        %s301 = scalar_lea.vmem %s1, %s300
        %p302 = pneg %p80
        %p303 = pneg %p77
        %s304 = sadd.s32 %s21, %s22
        %p305 = scmp.lt.s32.totalorder %s304, 1
        %s306 = scalar_select %p305, %s304, 1
        %s307 = scalar_lea.vmem %s2, %s306
        %p308 = pneg %p108
        %p309 = pneg %p105
        %s310 = sadd.s32 %s21, %s22
        %p311 = scmp.lt.s32.totalorder %s310, 1
        %s312 = scalar_select %p311, %s310, 1
        %s313 = scalar_lea.vmem %s3, %s312
        %p314 = pneg %p136
        %p315 = pneg %p133
        %p316 = pneg %p162
        %p317 = pneg %p159
        %p318 = scmp.lt.s32.totalorder %s21, 1
        %s319 = scalar_select %p318, %s21, 1
        %s320 = scalar_lea.vmem %s4, %s319
        %p321 = pneg %p188
        %p322 = pneg %p185
        %p323 = scmp.lt.s32.totalorder %s21, 1
        %s324 = scalar_select %p323, %s21, 1
        %s325 = scalar_lea.vmem %s5, %s324
        %s326 = sadd.s32 %s21, %s22
        %s327 = sadd.s32 %s21, %s22
        %p328 = scmp.lt.s32.totalorder %s327, 1
        %s329 = scalar_select %p328, %s327, 1
        %s330 = scalar_lea.vmem %s1, %s329
        %s331 = sadd.s32 %s21, %s22
        %s332 = sadd.s32 %s21, %s22
        %p333 = scmp.lt.s32.totalorder %s332, 1
        %s334 = scalar_select %p333, %s332, 1
        %s335 = scalar_lea.vmem %s2, %s334
        %s336 = sadd.s32 %s21, %s22
        %s337 = sadd.s32 %s21, %s22
        %p338 = scmp.lt.s32.totalorder %s337, 1
        %s339 = scalar_select %p338, %s337, 1
        %s340 = scalar_lea.vmem %s3, %s339
        %s341 = sadd.s32 %s21, %s22
        %p342 = scmp.lt.s32.totalorder %s21, 1
        %s343 = scalar_select %p342, %s21, 1
        %s344 = scalar_lea.vmem %s4, %s343
        %p345 = scmp.lt.s32.totalorder %s21, 1
        %s346 = scalar_select %p345, %s21, 1
        %s347 = scalar_lea.vmem %s5, %s346
        %p348 = scmp.eq.s32.totalorder %s22, 0
        // Predicated region
        $region75: #{_criterion_device.1} parent=69 // pred_check
          %p349 = pneg %p348
        $region76: #{_criterion_device.1} parent=69 // pred_check_branch
          %351 = sbr.rel (%p349) target = $region78
        $region77: #{_criterion_device.1} parent=69 // pred_region
          %vm352 = vcmask 0
          %353 = vst.msk [vmem:[%s344] sm:$0x1] %vm352, 0.0
          %354 = vst.msk [vmem:[%s347] sm:$0x1] %vm352, 0.0
        $region78: #{_criterion_device.1} parent=69 // pred_fallthru
          _
        %v355 = vld [vmem:[%s288] sm:$0xff]
        %v356 = vld [vmem:[%s288 + $0x8] sm:$0xff]
        %v357 = vld [vmem:[%s330] sm:$0x1]
        %v358 = vld [vmem:[%s335] sm:$0x1]
        %v359 = vld [vmem:[%s340] sm:$0x1]
        %v360 = vmul.f32 %v359, 0.75
        %v361 = vmul.f32 %v359, 0.25
        %v362 = vlaneseq
        %v363 = vshrl.u32 %v362, 7
        %v364 = vadd.s32 %v363, 8
        %v365 = vperm.slane %v357, 0
        %vm366 = vcmp.eq.s32.totalorder %v363, %v365
        %vm367 = vcmp.eq.s32.totalorder %v364, %v365
        %v368 = vsel %vm366, 1, 0
        %v369 = vsel %vm367, 1, 0
        %v370 = vcvt.s32.f32 %v368
        %v371 = vcvt.s32.f32 %v369
        %v372 = vand.u32 2147483647, %v355
        %v373 = vand.u32 2147483647, %v356
        %v374 = vsub.f32 0.0, %v372
        %v375 = vsub.f32 0.0, %v373
        %v376 = vmul.f32 %v374, 1.442695
        %v377 = vpow.pop %v376
        %v378 = vmul.f32 %v375, 1.442695
        %v379 = vpow.pop %v378
        %v380 = vmax.f32 %v355, 0.0
        %v381 = vmax.f32 %v356, 0.0
        %v382 = vadd.f32 %v377, 1.0
        %v383 = vlog2.pop %v382
        %v384 = vmul.f32 %v383, 0.6931472
        %v385 = vmul.f32 -0.5, %v377
        %v386 = vadd.f32 %v385, 1.0
        %v387 = vmul.f32 %v386, %v377
        %v388 = vand.u32 2147483647, %v377
        %vm389 = vcmp.lt.f32.partialorder %v388, 0.0004427343
        %v390 = vsel %vm389, %v387, %v384
        %v391 = vadd.f32 %v379, 1.0
        %v392 = vlog2.pop %v391
        %v393 = vmul.f32 %v392, 0.6931472
        %v394 = vmul.f32 -0.5, %v379
        %v395 = vadd.f32 %v394, 1.0
        %v396 = vmul.f32 %v395, %v379
        %v397 = vand.u32 2147483647, %v379
        %vm398 = vcmp.lt.f32.partialorder %v397, 0.0004427343
        %v399 = vsel %vm398, %v396, %v393
        %v400 = vadd.f32 %v380, %v390
        %v401 = vadd.f32 %v381, %v399
        %v402 = vadd.f32 %v377, 1.0
        %v403 = vadd.f32 %v379, 1.0
        %v404 = vrcp.pop %v402
        %v405 = vrcp.pop %v403
        %vm406 = vcmp.ge.f32.partialorder %v355, 0.0
        %vm407 = vcmp.ge.f32.partialorder %v356, 0.0
        %v408 = vmul.f32 %v377, %v404
        %v409 = vmul.f32 %v379, %v405
        %v410 = vsel %vm406, %v404, %v408
        %v411 = vsel %vm407, %v405, %v409
        %v412 = vmul.f32 %v355, %v370
        %v413 = vmul.f32 %v356, %v371
        %v414 = vsub.f32 1.0, %v370
        %v415 = vsub.f32 1.0, %v371
        %v417 = vperm.slane %v358, 0
        %v419 = vmul.f32 %v417, %v370
        %v420 = vmul.f32 %v417, %v371
        %v421 = vmul.f32 %v410, %v410
        %v422 = vmul.f32 %v411, %v411
        %v423 = vmul.f32 %v421, %v414
        %v424 = vmul.f32 %v422, %v415
        %v426 = vperm.slane %v360, 0
        %v428 = vmul.f32 %v426, %v423
        %v429 = vmul.f32 %v426, %v424
        %v430 = vadd.f32 %v428, %v419
        %v431 = vadd.f32 %v429, %v420
        %v432 = vmul.f32 %v412, %v417
        %v433 = vmul.f32 %v413, %v417
        %v434 = vsub.f32 %v400, %v432
        %v435 = vsub.f32 %v401, %v433
        %v436 = vmul.f32 %v434, %v430
        %v437 = vmul.f32 %v435, %v431
        %v438 = vmul.f32 %v410, 2.0
        %v439 = vmul.f32 %v411, 2.0
        %v440 = vsub.f32 %v438, 1.0
        %v441 = vsub.f32 %v439, 1.0
        %v442 = vmul.f32 %v370, %v440
        %v443 = vmul.f32 %v371, %v441
        %v444 = vsub.f32 %v410, %v442
        %v445 = vsub.f32 %v411, %v443
        %v446 = vmul.f32 %v370, 0.5
        %v447 = vmul.f32 %v371, 0.5
        %v449 = vperm.slane %v361, 0
        %v451 = vadd.f32 %v449, %v446
        %v452 = vadd.f32 %v449, %v447
        %v453 = vsub.f32 %v400, %v412
        %v454 = vsub.f32 %v401, %v413
        %v455 = vmul.f32 %v451, %v453
        %v456 = vmul.f32 %v452, %v454
        %v457 = vmul.f32 %v444, %v444
        %v458 = vmul.f32 %v445, %v445
        %v459 = vmul.f32 %v455, %v457
        %v460 = vmul.f32 %v456, %v458
        %v461 = vld [vmem:[%s344] sm:$0x1]
        %v462 = vadd.f32 %v436, %v437
        %463 = vadd.xlane.f32.xlu0 %v462
        %v464 = vpop.xlane.xlu0 %463
        %v465 = vrot.slane %v464, 4
        %v466 = vadd.f32 %v464, %v465
        %v467 = vrot.slane %v466, 2
        %v468 = vadd.f32 %v466, %v467
        %v469 = vrot.slane %v468, 1
        %v470 = vadd.f32 %v468, %v469
        %s471 = vtos %v470
        %v472 = vstv %s471
        %v473 = vadd.f32 %v461, %v472
        %vm474 = vcmask 0
        %475 = vst.msk [vmem:[%s344] sm:$0x1] %vm474, %v473
        %v476 = vld [vmem:[%s347] sm:$0x1]
        %v477 = vadd.f32 %v459, %v460
        %478 = vadd.xlane.f32.xlu0 %v477
        %v479 = vpop.xlane.xlu0 %478
        %v480 = vrot.slane %v479, 4
        %v481 = vadd.f32 %v479, %v480
        %v482 = vrot.slane %v481, 2
        %v483 = vadd.f32 %v481, %v482
        %v484 = vrot.slane %v483, 1
        %v485 = vadd.f32 %v483, %v484
        %s486 = vtos %v485
        %v487 = vstv %s486
        %v488 = vadd.f32 %v476, %v487
        %489 = vst.msk [vmem:[%s347] sm:$0x1] %vm474, %v488
        %p490 = scmp.lt.s32.totalorder %s21, 1
        %s491 = scalar_select %p490, %s21, 1
        %s492 = scalar_lea.vmem %s4, %s491
        %p493 = scmp.lt.s32.totalorder %s21, 1
        %s494 = scalar_select %p493, %s21, 1
        %s495 = scalar_lea.vmem %s5, %s494
        // Predicated region
        $region79: #{_criterion_device.1} parent=69 // pred_check
          %p496 = pneg %p159
        $region80: #{_criterion_device.1} parent=69 // pred_check_branch
          %498 = sbr.rel (%p496) target = $region82
        $region81: #{_criterion_device.1} parent=69 // pred_region
          _
        $region82: #{_criterion_device.1} parent=69 // pred_fallthru
          _
        // Predicated region
        $region83: #{_criterion_device.1} parent=69 // pred_check
          %p499 = pneg %p185
        $region84: #{_criterion_device.1} parent=69 // pred_check_branch
          %501 = sbr.rel (%p499) target = $region86
        $region85: #{_criterion_device.1} parent=69 // pred_region
          _
        $region86: #{_criterion_device.1} parent=69 // pred_fallthru
          _
      $region70: #{_criterion_device.1} parent=5 // pred_fallthru
        _
      %p502 = scmp.le.s32.totalorder 2, %s12
      // Predicated region
      $region87: #{_criterion_device.1} parent=5 // pred_check
        %p503 = pneg %p502
      $region88: #{_criterion_device.1} parent=5 // pred_check_branch
        %505 = sbr.rel (%p503) target = $region90
      $region89: #{_criterion_device.1} parent=5 // pred_region
        %s506 = ssub.s32 %s12, 2
        // Predicated region
        $region91: #{_criterion_device.1} parent=89 // pred_check
          %p507 = pneg %p165
        $region92: #{_criterion_device.1} parent=89 // pred_check_branch
          %509 = sbr.rel (%p507) target = $region94
        $region93: #{_criterion_device.1} parent=89 // pred_region
          %p510 = scmp.lt.s32.totalorder %s23, 1
          %s511 = scalar_select %p510, %s23, 1
          %s512 = scalar_lea.vmem %s4, %s511
        $region94: #{_criterion_device.1} parent=89 // pred_fallthru
          _
        // Predicated region
        $region95: #{_criterion_device.1} parent=89 // pred_check
          %p513 = pneg %p191
        $region96: #{_criterion_device.1} parent=89 // pred_check_branch
          %515 = sbr.rel (%p513) target = $region98
        $region97: #{_criterion_device.1} parent=89 // pred_region
          %p516 = scmp.lt.s32.totalorder %s23, 1
          %s517 = scalar_select %p516, %s23, 1
          %s518 = scalar_lea.vmem %s5, %s517
        $region98: #{_criterion_device.1} parent=89 // pred_fallthru
          _
      $region90: #{_criterion_device.1} parent=5 // pred_fallthru
        _
    $region6: #{_criterion_device.1} parent=1 // loop_footer
      %s16 = sadd.s32 1, %s12
    $region7: #{_criterion_device.1} parent=1 // loop_footer_branch
      %11 = sbr.rel target = $region3
    $region8: #{_criterion_device.1} parent=1 // loop_exit
      _

</llo_original>
